<compile_context>
chip_gen: v7x
topology: tpu7x:2x2x1
jax: 0.10.0
libtpu: 0.0.40
codegen_flags: <defaults>
</compile_context>

<pallas_src>
import jax
import jax.numpy as jnp
from jax.experimental import pallas as pl
from jax.experimental.pallas import tpu as pltpu

NUM_FREQ_CH = 10  # number of frequency positional-encoding channels (k = 0..9)


def make_freq_table(f_dim):
    """(10, F) table: row k = cos(2^k * pi * n), n = arange(F)/(F-1).

    Computed with float32 phases and XLA's cos (outside the Pallas kernel), so
    it matches both the torch module (float32 math) and a JAX port of it.
    """
    assert f_dim > 1, "f_dim must be > 1 (division by f_dim - 1)"
    n = jnp.arange(f_dim, dtype=jnp.float32) / (f_dim - 1)
    rows = [jnp.cos((2.0 ** k) * jnp.pi * n) for k in range(NUM_FREQ_CH)]
    return jnp.stack(rows, axis=0)  # (10, F), float32


def add_freq_encoding_kernel(emb_ref, x_ref, o_ref):
    # emb_ref: (10, 2F)   x_ref: (C, tT, 2F)   o_ref: (C + 10, tT, 2F)
    C, tT, L = x_ref.shape

    # Pass-through of the original channels in one lane-dense slab store.
    o_ref[0:C, :, :] = x_ref[...]

    # Frequency positional encodings: each (1, 2F) table row broadcast over
    # time (sublanes).  Working set per step is a single (tT, 2F) tile.
    for k in range(NUM_FREQ_CH):
        row = emb_ref[k:k + 1, :]                           # (1, 2F)
        o_ref[C + k, :, :] = jnp.broadcast_to(row, (tT, L))


def _pick_time_tile(T, c_out, row_bytes, target_bytes):
    """Largest tT with (tT == T) or (tT % 8 == 0 and T % tT == 0) such that one
    output block (c_out * tT * row_bytes) stays under ~target_bytes."""
    max_rows = max(8, target_bytes // max(1, c_out * row_bytes))
    if T <= max_rows:
        return T
    cand = min((max_rows // 8) * 8, (T // 8) * 8)
    while cand >= 8:
        if T % cand == 0:
            return cand
        cand -= 8
    return T  # no clean divisor: fall back to the full time axis


def add_freq_encoding(x, *, target_block_bytes=4 << 20):
    """x: [B, C, T, F, 2] -> [B, C + 10, T, F, 2] (matches the PyTorch module)."""
    B, C, T, Fdim, R = x.shape
    assert R == 2, "last axis must be the real/imag pair of size 2"

    dtype = x.dtype
    itemsize = jnp.dtype(dtype).itemsize
    L = 2 * Fdim
    C_out = C + NUM_FREQ_CH

    # Interleaved table for the merged (F, 2) axis: emb_i[k, 2f + r] = emb[k, f].
    emb = make_freq_table(Fdim)                              # (10, F)
    emb_i = jnp.repeat(emb, 2, axis=-1).astype(dtype)        # (10, 2F)

    # Free reshape: merge the contiguous trailing (F, 2) dims -> lane-dense 2F.
    x2 = x.reshape(B, C, T, L)

    row_bytes = L * itemsize
    tT = _pick_time_tile(T, C_out, row_bytes, target_block_bytes)
    grid = (B, T // tT)

    in_block = C * tT * row_bytes
    out_block = C_out * tT * row_bytes
    emb_bytes = NUM_FREQ_CH * row_bytes
    vmem_limit = 2 * (in_block + out_block) + 2 * emb_bytes + (2 << 20)
    vmem_limit = int(min(max(vmem_limit, 16 << 20), 64 << 20))

    out2 = pl.pallas_call(
        add_freq_encoding_kernel,
        out_shape=jax.ShapeDtypeStruct((B, C_out, T, L), dtype),
        grid=grid,
        in_specs=[
            pl.BlockSpec((NUM_FREQ_CH, L), lambda b, t: (0, 0)),
            pl.BlockSpec((None, C, tT, L), lambda b, t: (b, 0, t, 0)),
        ],
        out_specs=pl.BlockSpec((None, C_out, tT, L), lambda b, t: (b, 0, t, 0)),
        compiler_params=pltpu.CompilerParams(
            dimension_semantics=("parallel", "parallel"),
            vmem_limit_bytes=vmem_limit,
        ),
    )(emb_i, x2)                                             # [B, C+10, T, 2F]

    return out2.reshape(B, C_out, T, Fdim, 2)                # [B, C+10, T, F, 2]


def reference(x):
    """Pure-JAX mirror of the PyTorch forward (for verification)."""
    B, C, T, Fdim, _ = x.shape
    emb = make_freq_table(Fdim).T.astype(x.dtype)            # (F, 10) == module param
    femb2 = jnp.broadcast_to(emb, (B, T, 2, Fdim, NUM_FREQ_CH))
    femb2 = jnp.transpose(femb2, (0, 4, 1, 3, 2))            # (B, 10, T, F, 2)
    return jnp.concatenate([x, femb2], axis=1)


if __name__ == "__main__":
    # Small shapes consistent with the module: [B, C, T, F, 2].
    B, C, T, Fdim = 2, 2, 16, 128
    key = jax.random.PRNGKey(0)
    x = jax.random.normal(key, (B, C, T, Fdim, 2), dtype=jnp.float32)

    out = add_freq_encoding(x)
    out = jax.block_until_ready(out)

    ref = reference(x)
    assert out.shape == (B, C + NUM_FREQ_CH, T, Fdim, 2), out.shape
    assert jnp.allclose(out, ref, atol=1e-6, rtol=1e-6), "mismatch vs reference"

    print("KERNEL_OK")
</pallas_src>

<mosaic_0001>
module attributes {stable_mosaic.version = 11 : i64} {
  func.func @add_freq_encoding_kernel(%arg0: i32, %arg1: i32, %arg2: memref<10x256xf32, #tpu.memory_space<vmem>>, %arg3: memref<1x2x16x256xf32, #tpu.memory_space<vmem>>, %arg4: memref<1x12x16x256xf32, #tpu.memory_space<vmem>>) attributes {dimension_semantics = [#tpu.dimension_semantics<parallel>, #tpu.dimension_semantics<parallel>], iteration_bounds = array<i64: 2, 1>, scalar_prefetch = 0 : i64, scratch_operands = 0 : i64, tpu.core_type = #tpu.core_type<tc>, window_params = [{pipeline_mode = #tpu.pipeline_mode<synchronous>, transform_indices = @transform_0, window_bounds = array<i64: 10, 256>}, {transform_indices = @transform_1, window_bounds = array<i64: 1, 2, 16, 256>}, {transform_indices = @transform_2, window_bounds = array<i64: 1, 12, 16, 256>}]} {
    %c0 = arith.constant 0 : index
    %c0_0 = arith.constant 0 : index
    %c0_1 = arith.constant 0 : index
    %c0_2 = arith.constant 0 : index
    %0 = vector.load %arg3[%c0, %c0_0, %c0_1, %c0_2] : memref<1x2x16x256xf32, #tpu.memory_space<vmem>>, vector<1x2x16x256xf32>
    %1 = vector.shape_cast %0 : vector<1x2x16x256xf32> to vector<2x16x256xf32>
    %c0_3 = arith.constant 0 : index
    %c0_4 = arith.constant 0 : index
    %c0_5 = arith.constant 0 : index
    %c0_6 = arith.constant 0 : index
    %2 = vector.load %arg4[%c0_3, %c0_4, %c0_5, %c0_6] : memref<1x12x16x256xf32, #tpu.memory_space<vmem>>, vector<1x2x16x256xf32>
    %3 = vector.shape_cast %2 : vector<1x2x16x256xf32> to vector<2x16x256xf32>
    %4 = vector.shape_cast %1 : vector<2x16x256xf32> to vector<1x2x16x256xf32>
    tpu.vector_store %arg4[%c0_3, %c0_4, %c0_5, %c0_6], %4 {strides = array<i32>} : memref<1x12x16x256xf32, #tpu.memory_space<vmem>>, vector<1x2x16x256xf32>,
    %c0_7 = arith.constant 0 : index
    %c0_8 = arith.constant 0 : index
    %5 = vector.load %arg2[%c0_7, %c0_8] : memref<10x256xf32, #tpu.memory_space<vmem>>, vector<1x256xf32>
    %6 = vector.shape_cast %5 : vector<1x256xf32> to vector<1x256xf32>
    %7 = vector.broadcast %6 : vector<1x256xf32> to vector<16x256xf32>
    %c0_9 = arith.constant 0 : index
    %c2 = arith.constant 2 : index
    %c0_10 = arith.constant 0 : index
    %c0_11 = arith.constant 0 : index
    %8 = vector.load %arg4[%c0_9, %c2, %c0_10, %c0_11] : memref<1x12x16x256xf32, #tpu.memory_space<vmem>>, vector<1x1x16x256xf32>
    %9 = vector.shape_cast %8 : vector<1x1x16x256xf32> to vector<16x256xf32>
    %10 = vector.shape_cast %7 : vector<16x256xf32> to vector<1x1x16x256xf32>
    tpu.vector_store %arg4[%c0_9, %c2, %c0_10, %c0_11], %10 {strides = array<i32>} : memref<1x12x16x256xf32, #tpu.memory_space<vmem>>, vector<1x1x16x256xf32>,
    %c1 = arith.constant 1 : index
    %c0_12 = arith.constant 0 : index
    %11 = vector.load %arg2[%c1, %c0_12] : memref<10x256xf32, #tpu.memory_space<vmem>>, vector<1x256xf32>
    %12 = vector.shape_cast %11 : vector<1x256xf32> to vector<1x256xf32>
    %13 = vector.broadcast %12 : vector<1x256xf32> to vector<16x256xf32>
    %c0_13 = arith.constant 0 : index
    %c3 = arith.constant 3 : index
    %c0_14 = arith.constant 0 : index
    %c0_15 = arith.constant 0 : index
    %14 = vector.load %arg4[%c0_13, %c3, %c0_14, %c0_15] : memref<1x12x16x256xf32, #tpu.memory_space<vmem>>, vector<1x1x16x256xf32>
    %15 = vector.shape_cast %14 : vector<1x1x16x256xf32> to vector<16x256xf32>
    %16 = vector.shape_cast %13 : vector<16x256xf32> to vector<1x1x16x256xf32>
    tpu.vector_store %arg4[%c0_13, %c3, %c0_14, %c0_15], %16 {strides = array<i32>} : memref<1x12x16x256xf32, #tpu.memory_space<vmem>>, vector<1x1x16x256xf32>,
    %c2_16 = arith.constant 2 : index
    %c0_17 = arith.constant 0 : index
    %17 = vector.load %arg2[%c2_16, %c0_17] : memref<10x256xf32, #tpu.memory_space<vmem>>, vector<1x256xf32>
    %18 = vector.shape_cast %17 : vector<1x256xf32> to vector<1x256xf32>
    %19 = vector.broadcast %18 : vector<1x256xf32> to vector<16x256xf32>
    %c0_18 = arith.constant 0 : index
    %c4 = arith.constant 4 : index
    %c0_19 = arith.constant 0 : index
    %c0_20 = arith.constant 0 : index
    %20 = vector.load %arg4[%c0_18, %c4, %c0_19, %c0_20] : memref<1x12x16x256xf32, #tpu.memory_space<vmem>>, vector<1x1x16x256xf32>
    %21 = vector.shape_cast %20 : vector<1x1x16x256xf32> to vector<16x256xf32>
    %22 = vector.shape_cast %19 : vector<16x256xf32> to vector<1x1x16x256xf32>
    tpu.vector_store %arg4[%c0_18, %c4, %c0_19, %c0_20], %22 {strides = array<i32>} : memref<1x12x16x256xf32, #tpu.memory_space<vmem>>, vector<1x1x16x256xf32>,
    %c3_21 = arith.constant 3 : index
    %c0_22 = arith.constant 0 : index
    %23 = vector.load %arg2[%c3_21, %c0_22] : memref<10x256xf32, #tpu.memory_space<vmem>>, vector<1x256xf32>
    %24 = vector.shape_cast %23 : vector<1x256xf32> to vector<1x256xf32>
    %25 = vector.broadcast %24 : vector<1x256xf32> to vector<16x256xf32>
    %c0_23 = arith.constant 0 : index
    %c5 = arith.constant 5 : index
    %c0_24 = arith.constant 0 : index
    %c0_25 = arith.constant 0 : index
    %26 = vector.load %arg4[%c0_23, %c5, %c0_24, %c0_25] : memref<1x12x16x256xf32, #tpu.memory_space<vmem>>, vector<1x1x16x256xf32>
    %27 = vector.shape_cast %26 : vector<1x1x16x256xf32> to vector<16x256xf32>
    %28 = vector.shape_cast %25 : vector<16x256xf32> to vector<1x1x16x256xf32>
    tpu.vector_store %arg4[%c0_23, %c5, %c0_24, %c0_25], %28 {strides = array<i32>} : memref<1x12x16x256xf32, #tpu.memory_space<vmem>>, vector<1x1x16x256xf32>,
    %c4_26 = arith.constant 4 : index
    %c0_27 = arith.constant 0 : index
    %29 = vector.load %arg2[%c4_26, %c0_27] : memref<10x256xf32, #tpu.memory_space<vmem>>, vector<1x256xf32>
    %30 = vector.shape_cast %29 : vector<1x256xf32> to vector<1x256xf32>
    %31 = vector.broadcast %30 : vector<1x256xf32> to vector<16x256xf32>
    %c0_28 = arith.constant 0 : index
    %c6 = arith.constant 6 : index
    %c0_29 = arith.constant 0 : index
    %c0_30 = arith.constant 0 : index
    %32 = vector.load %arg4[%c0_28, %c6, %c0_29, %c0_30] : memref<1x12x16x256xf32, #tpu.memory_space<vmem>>, vector<1x1x16x256xf32>
    %33 = vector.shape_cast %32 : vector<1x1x16x256xf32> to vector<16x256xf32>
    %34 = vector.shape_cast %31 : vector<16x256xf32> to vector<1x1x16x256xf32>
    tpu.vector_store %arg4[%c0_28, %c6, %c0_29, %c0_30], %34 {strides = array<i32>} : memref<1x12x16x256xf32, #tpu.memory_space<vmem>>, vector<1x1x16x256xf32>,
    %c5_31 = arith.constant 5 : index
    %c0_32 = arith.constant 0 : index
    %35 = vector.load %arg2[%c5_31, %c0_32] : memref<10x256xf32, #tpu.memory_space<vmem>>, vector<1x256xf32>
    %36 = vector.shape_cast %35 : vector<1x256xf32> to vector<1x256xf32>
    %37 = vector.broadcast %36 : vector<1x256xf32> to vector<16x256xf32>
    %c0_33 = arith.constant 0 : index
    %c7 = arith.constant 7 : index
    %c0_34 = arith.constant 0 : index
    %c0_35 = arith.constant 0 : index
    %38 = vector.load %arg4[%c0_33, %c7, %c0_34, %c0_35] : memref<1x12x16x256xf32, #tpu.memory_space<vmem>>, vector<1x1x16x256xf32>
    %39 = vector.shape_cast %38 : vector<1x1x16x256xf32> to vector<16x256xf32>
    %40 = vector.shape_cast %37 : vector<16x256xf32> to vector<1x1x16x256xf32>
    tpu.vector_store %arg4[%c0_33, %c7, %c0_34, %c0_35], %40 {strides = array<i32>} : memref<1x12x16x256xf32, #tpu.memory_space<vmem>>, vector<1x1x16x256xf32>,
    %c6_36 = arith.constant 6 : index
    %c0_37 = arith.constant 0 : index
    %41 = vector.load %arg2[%c6_36, %c0_37] : memref<10x256xf32, #tpu.memory_space<vmem>>, vector<1x256xf32>
    %42 = vector.shape_cast %41 : vector<1x256xf32> to vector<1x256xf32>
    %43 = vector.broadcast %42 : vector<1x256xf32> to vector<16x256xf32>
    %c0_38 = arith.constant 0 : index
    %c8 = arith.constant 8 : index
    %c0_39 = arith.constant 0 : index
    %c0_40 = arith.constant 0 : index
    %44 = vector.load %arg4[%c0_38, %c8, %c0_39, %c0_40] : memref<1x12x16x256xf32, #tpu.memory_space<vmem>>, vector<1x1x16x256xf32>
    %45 = vector.shape_cast %44 : vector<1x1x16x256xf32> to vector<16x256xf32>
    %46 = vector.shape_cast %43 : vector<16x256xf32> to vector<1x1x16x256xf32>
    tpu.vector_store %arg4[%c0_38, %c8, %c0_39, %c0_40], %46 {strides = array<i32>} : memref<1x12x16x256xf32, #tpu.memory_space<vmem>>, vector<1x1x16x256xf32>,
    %c7_41 = arith.constant 7 : index
    %c0_42 = arith.constant 0 : index
    %47 = vector.load %arg2[%c7_41, %c0_42] : memref<10x256xf32, #tpu.memory_space<vmem>>, vector<1x256xf32>
    %48 = vector.shape_cast %47 : vector<1x256xf32> to vector<1x256xf32>
    %49 = vector.broadcast %48 : vector<1x256xf32> to vector<16x256xf32>
    %c0_43 = arith.constant 0 : index
    %c9 = arith.constant 9 : index
    %c0_44 = arith.constant 0 : index
    %c0_45 = arith.constant 0 : index
    %50 = vector.load %arg4[%c0_43, %c9, %c0_44, %c0_45] : memref<1x12x16x256xf32, #tpu.memory_space<vmem>>, vector<1x1x16x256xf32>
    %51 = vector.shape_cast %50 : vector<1x1x16x256xf32> to vector<16x256xf32>
    %52 = vector.shape_cast %49 : vector<16x256xf32> to vector<1x1x16x256xf32>
    tpu.vector_store %arg4[%c0_43, %c9, %c0_44, %c0_45], %52 {strides = array<i32>} : memref<1x12x16x256xf32, #tpu.memory_space<vmem>>, vector<1x1x16x256xf32>,
    %c8_46 = arith.constant 8 : index
    %c0_47 = arith.constant 0 : index
    %53 = vector.load %arg2[%c8_46, %c0_47] : memref<10x256xf32, #tpu.memory_space<vmem>>, vector<1x256xf32>
    %54 = vector.shape_cast %53 : vector<1x256xf32> to vector<1x256xf32>
    %55 = vector.broadcast %54 : vector<1x256xf32> to vector<16x256xf32>
    %c0_48 = arith.constant 0 : index
    %c10 = arith.constant 10 : index
    %c0_49 = arith.constant 0 : index
    %c0_50 = arith.constant 0 : index
    %56 = vector.load %arg4[%c0_48, %c10, %c0_49, %c0_50] : memref<1x12x16x256xf32, #tpu.memory_space<vmem>>, vector<1x1x16x256xf32>
    %57 = vector.shape_cast %56 : vector<1x1x16x256xf32> to vector<16x256xf32>
    %58 = vector.shape_cast %55 : vector<16x256xf32> to vector<1x1x16x256xf32>
    tpu.vector_store %arg4[%c0_48, %c10, %c0_49, %c0_50], %58 {strides = array<i32>} : memref<1x12x16x256xf32, #tpu.memory_space<vmem>>, vector<1x1x16x256xf32>,
    %c9_51 = arith.constant 9 : index
    %c0_52 = arith.constant 0 : index
    %59 = vector.load %arg2[%c9_51, %c0_52] : memref<10x256xf32, #tpu.memory_space<vmem>>, vector<1x256xf32>
    %60 = vector.shape_cast %59 : vector<1x256xf32> to vector<1x256xf32>
    %61 = vector.broadcast %60 : vector<1x256xf32> to vector<16x256xf32>
    %c0_53 = arith.constant 0 : index
    %c11 = arith.constant 11 : index
    %c0_54 = arith.constant 0 : index
    %c0_55 = arith.constant 0 : index
    %62 = vector.load %arg4[%c0_53, %c11, %c0_54, %c0_55] : memref<1x12x16x256xf32, #tpu.memory_space<vmem>>, vector<1x1x16x256xf32>
    %63 = vector.shape_cast %62 : vector<1x1x16x256xf32> to vector<16x256xf32>
    %64 = vector.shape_cast %61 : vector<16x256xf32> to vector<1x1x16x256xf32>
    tpu.vector_store %arg4[%c0_53, %c11, %c0_54, %c0_55], %64 {strides = array<i32>} : memref<1x12x16x256xf32, #tpu.memory_space<vmem>>, vector<1x1x16x256xf32>,
    return
  }
  func.func @transform_0(%arg0: i32, %arg1: i32) -> (i32, i32) {
    %c0_i32 = arith.constant 0 : i32
    %c0_i32_0 = arith.constant 0 : i32
    %c0_i32_1 = arith.constant 0 : i32
    return %c0_i32, %c0_i32_0 : i32, i32
  }
  func.func @transform_1(%arg0: i32, %arg1: i32) -> (i32, i32, i32, i32) {
    %c0_i32 = arith.constant 0 : i32
    %c0_i32_0 = arith.constant 0 : i32
    %c0_i32_1 = arith.constant 0 : i32
    return %arg0, %c0_i32, %arg1, %c0_i32_0 : i32, i32, i32, i32
  }
  func.func @transform_2(%arg0: i32, %arg1: i32) -> (i32, i32, i32, i32) {
    %c0_i32 = arith.constant 0 : i32
    %c0_i32_0 = arith.constant 0 : i32
    %c0_i32_1 = arith.constant 0 : i32
    return %arg0, %c0_i32, %arg1, %c0_i32_0 : i32, i32, i32, i32
  }
}

</mosaic_0001>

<llo_original>
// kernel: tpu_custom_call.1
$region0: #{tpu_custom_call.1}
  #allocation0 [shape = 'u32[]', space=smem, size = 0x4, offset = 0x4, fixed_abs, tag = 'smem constant byte address 0x4 - core index']
  #allocation1 [shape = 'u32[144,128]{1,0:T(1,128)}', space=vmem, size = 0x12000, scoped, tag = 'internal scratch']
  %s0 = inlined_call_operand.hbm [shape: f32[10,256], index: 0, kind: input, shape index: {}]
  %s1 = inlined_call_operand.hbm [shape: f32[2,2,16,256], index: 1, kind: input, shape index: {}]
  %s2 = inlined_call_operand.hbm [shape: f32[2,12,16,256], index: 2, kind: output, shape index: {}]
  %s3 = sld [smem:[#allocation0]]
  $region49: #{tpu_custom_call.1} parent=0
    _
  %s5 = ssub.s32 1, %s3
  %s6 = scalar_select 0, %s5, %s3
  $region1: #{tpu_custom_call.1} parent=0
    #allocation2 [shape = 'u8[16384]{0}', space=vmem, size = 0x4000, scoped, tag = 'input window, operand 0, single buffered']
    #allocation3 [shape = 's32[2]{0}', space=sflag, size = 0x8, scoped, tag = 'scoped memory for tpu_custom_call.1']
    #allocation4 [shape = 's32[2]{0}', space=sflag, size = 0x8, scoped, tag = 'scoped memory for tpu_custom_call.1']
    #allocation5 [shape = 'u8[65536]{0}', space=vmem, size = 0x10000, scoped, tag = 'input window, operand 1']
    #allocation6 [shape = 's32[2]{0}', space=sflag, size = 0x8, scoped, tag = 'scoped memory for tpu_custom_call.1']
    #allocation7 [shape = 'u8[393216]{0}', space=vmem, size = 0x60000, scoped, tag = 'output window, operand 0']
    %7 = vsyncpa [#allocation3], 0
    %8 = vsyncpa [#allocation6], 0
    %s9 = scalar_lea.sflag [#allocation6], 1
    %10 = vsyncpa %s9, 0
    %11 = vsyncpa [#allocation4], 0
    %s12 = scalar_lea.sflag [#allocation4], 1
    %13 = vsyncpa %s12, 0
    loop: start=0, step=1, limit=4
    $region2: #{tpu_custom_call.1} parent=1 // loop_pre_header
      _
    $region3: #{tpu_custom_call.1} parent=1 // loop_header
      %s15 = sphi 0, %s19
      %p16 = scmp.ge.s32.totalorder %s15, 4
      %s22 = sphi 0, %s34
      %s23 = sphi 0, %s30
      %s24 = sphi 0, %s22
      %s25 = sphi 0, %s23
      %s26 = sphi 0, %s24
      %s27 = sphi 0, %s25
      %s35 = sphi 0, %s35
      %s37 = sphi 0, %s35
      %s38 = sphi 0, %s37
      %s52 = sphi 0, %s38
      %s60 = sphi 0, %s62
      %s63 = sphi 0, %s60
      %s64 = sphi 0, %s63
      %s80 = sphi 0, %s64
      %s88 = sphi 0, %s90
      %s91 = sphi 0, %s88
      %s92 = sphi 0, %s91
      %s108 = sphi 0, %s92
    $region4: #{tpu_custom_call.1} parent=1 // loop_header_branch
      %18 = sbr.rel (%p16) target = $region8
    $region5: #{tpu_custom_call.1} parent=1 // loop_body
      %s20 = ssub.s32 %s15, 1
      %s21 = ssub.s32 %s15, 2
      %s28 = sadd.s32 1, %s23
      %p29 = scmp.ge.s32.totalorder %s28, 1
      %s30 = scalar_select %p29, 0, %s28
      %s31 = sadd.s32 1, %s22
      %s32 = scalar_select %p29, %s31, %s22
      %p33 = scmp.ge.s32.totalorder %s32, 2
      %s34 = scalar_select %p33, 0, %s32
      %s36 = sadd.s32 %s35, 1
      %p39 = scmp.eq.s32.totalorder %s15, 1
      %p40 = scmp.ne.s32.totalorder %s35, %s37
      %p41 = scmp.eq.s32.totalorder %s15, 0
      %p42 = por %p40, %p41
      %p43 = scmp.ne.s32.totalorder %s35, %s37
      %p44 = scmp.eq.s32.totalorder %s20, 1
      %p45 = por %p43, %p44
      %p46 = scmp.ne.s32.totalorder %s37, %s38
      %p47 = scmp.eq.s32.totalorder %s20, 0
      %p48 = por %p46, %p47
      %p49 = scmp.ne.s32.totalorder %s37, %s38
      %p50 = scmp.eq.s32.totalorder %s21, 1
      %p51 = por %p49, %p50
      %p53 = scmp.ne.s32.totalorder %s38, %s52
      %p54 = scmp.eq.s32.totalorder %s21, 0
      %p55 = por %p53, %p54
      %s56 = ssub.s32 %s22, %s34
      %s57 = ssub.s32 %s23, %s30
      %s58 = sor.u32 %s56, %s57
      %p59 = scmp.eq.s32.totalorder %s58, 0
      %s61 = sadd.s32 %s60, 1
      %s62 = scalar_select %p59, %s60, %s61
      %p65 = pneg %p59
      %p66 = scmp.eq.s32.totalorder %s15, 1
      %p67 = por %p65, %p66
      %p68 = scmp.ne.s32.totalorder %s60, %s63
      %p69 = scmp.eq.s32.totalorder %s15, 0
      %p70 = por %p68, %p69
      %p71 = scmp.ne.s32.totalorder %s60, %s63
      %p72 = scmp.eq.s32.totalorder %s20, 1
      %p73 = por %p71, %p72
      %p74 = scmp.ne.s32.totalorder %s63, %s64
      %p75 = scmp.eq.s32.totalorder %s20, 0
      %p76 = por %p74, %p75
      %p77 = scmp.ne.s32.totalorder %s63, %s64
      %p78 = scmp.eq.s32.totalorder %s21, 1
      %p79 = por %p77, %p78
      %p81 = scmp.ne.s32.totalorder %s64, %s80
      %p82 = scmp.eq.s32.totalorder %s21, 0
      %p83 = por %p81, %p82
      %s84 = ssub.s32 %s22, %s34
      %s85 = ssub.s32 %s23, %s30
      %s86 = sor.u32 %s84, %s85
      %p87 = scmp.eq.s32.totalorder %s86, 0
      %s89 = sadd.s32 %s88, 1
      %s90 = scalar_select %p87, %s88, %s89
      %p93 = pneg %p87
      %p94 = scmp.eq.s32.totalorder %s15, 1
      %p95 = por %p93, %p94
      %p96 = scmp.ne.s32.totalorder %s88, %s91
      %p97 = scmp.eq.s32.totalorder %s15, 0
      %p98 = por %p96, %p97
      %p99 = scmp.ne.s32.totalorder %s88, %s91
      %p100 = scmp.eq.s32.totalorder %s20, 1
      %p101 = por %p99, %p100
      %p102 = scmp.ne.s32.totalorder %s91, %s92
      %p103 = scmp.eq.s32.totalorder %s20, 0
      %p104 = por %p102, %p103
      %p105 = scmp.ne.s32.totalorder %s91, %s92
      %p106 = scmp.eq.s32.totalorder %s21, 1
      %p107 = por %p105, %p106
      %p109 = scmp.ne.s32.totalorder %s92, %s108
      %p110 = scmp.eq.s32.totalorder %s21, 0
      %p111 = por %p109, %p110
      %p112 = scmp.le.s32.totalorder 1, %s15
      %p113 = scmp.lt.s32.totalorder %s15, 3
      %p114 = pnand %p112, %p113
      %p115 = pneg %p114
      // Predicated region
      $region9: #{tpu_custom_call.1} parent=5 // pred_check
        _
      $region10: #{tpu_custom_call.1} parent=5 // pred_check_branch
        %117 = sbr.rel (%p114) target = $region12
      $region11: #{tpu_custom_call.1} parent=5 // pred_region
        %s118 = ssub.s32 %s15, 1
        // Predicated region
        $region13: #{tpu_custom_call.1} parent=11 // pred_check
          %p119 = pneg %p48
        $region14: #{tpu_custom_call.1} parent=11 // pred_check_branch
          %121 = sbr.rel (%p119) target = $region16
        $region15: #{tpu_custom_call.1} parent=11 // pred_region
          %s123 = ssub.s32 512, 512
          %124 = vsyncadd [#allocation3], %s123
          %s125 = sshll.u32 [#allocation2], 4
          %s126 = int_to_ptr.vmem [resolvable:$true] %s125
          %131 = dma.hbm_to_vmem [thread:$0]  %s0, 512, %s126, [#allocation3], 256, 256, 16
        $region16: #{tpu_custom_call.1} parent=11 // pred_fallthru
          _
      $region12: #{tpu_custom_call.1} parent=5 // pred_fallthru
        _
      %p132 = scmp.lt.s32.totalorder %s15, 2
      // Predicated region
      $region17: #{tpu_custom_call.1} parent=5 // pred_check
        %p133 = pneg %p132
      $region18: #{tpu_custom_call.1} parent=5 // pred_check_branch
        %135 = sbr.rel (%p133) target = $region20
      $region19: #{tpu_custom_call.1} parent=5 // pred_region
        // Predicated region
        $region21: #{tpu_custom_call.1} parent=19 // pred_check
          %p136 = pneg %p70
        $region22: #{tpu_custom_call.1} parent=19 // pred_check_branch
          %138 = sbr.rel (%p136) target = $region24
        $region23: #{tpu_custom_call.1} parent=19 // pred_region
          %s139 = sand.u32 %s60, 1
          %s140 = scalar_lea.sflag [#allocation6], %s139
          %s141 = sand.u32 %s60, 1
          %s142 = smul.addr %s141, 64
          %s143 = scalar_lea.vmem [#allocation5], %s142
          %s144 = smul.u32 2, %s23
          %s146 = ssub.s32 1024, 1024
          %147 = vsyncadd %s140, %s146
          %s148 = smul.addr %s144, 2
          %s149 = smul.addr %s22, 8
          %s150 = sadd.s32 %s148, %s149
          %s151 = smul.addr %s150, 128
          %s152 = scalar_lea.hbm %s1, %s151
          %s153 = sshll.u32 %s143, 4
          %s154 = int_to_ptr.vmem [resolvable:$true] %s153
          %159 = dma.hbm_to_vmem [thread:$0]  %s152, 1024, %s154, %s140, 256, 256, 16
        $region24: #{tpu_custom_call.1} parent=19 // pred_fallthru
          _
      $region20: #{tpu_custom_call.1} parent=5 // pred_fallthru
        _
      %p160 = scmp.le.s32.totalorder 1, %s15
      %p161 = scmp.lt.s32.totalorder %s15, 3
      %p162 = pnand %p160, %p161
      %p163 = pneg %p162
      // Predicated region
      $region25: #{tpu_custom_call.1} parent=5 // pred_check
        _
      $region26: #{tpu_custom_call.1} parent=5 // pred_check_branch
        %165 = sbr.rel (%p162) target = $region28
      $region27: #{tpu_custom_call.1} parent=5 // pred_region
        %s166 = ssub.s32 %s15, 1
        // Predicated region
        $region29: #{tpu_custom_call.1} parent=27 // pred_check
          %p167 = pneg %p48
        $region30: #{tpu_custom_call.1} parent=27 // pred_check_branch
          %169 = sbr.rel (%p167) target = $region32
        $region31: #{tpu_custom_call.1} parent=27 // pred_region
          %170 = dma.done [#allocation3], 512
        $region32: #{tpu_custom_call.1} parent=27 // pred_fallthru
          _
        %s171 = sand.u32 %s63, 1
        %s172 = scalar_lea.sflag [#allocation6], %s171
        %s173 = sand.u32 %s63, 1
        %s174 = smul.addr %s173, 64
        %s175 = scalar_lea.vmem [#allocation5], %s174
        // Predicated region
        $region33: #{tpu_custom_call.1} parent=27 // pred_check
          %p176 = pneg %p76
        $region34: #{tpu_custom_call.1} parent=27 // pred_check_branch
          %178 = sbr.rel (%p176) target = $region36
        $region35: #{tpu_custom_call.1} parent=27 // pred_region
          %179 = dma.done %s172, 1024
        $region36: #{tpu_custom_call.1} parent=27 // pred_fallthru
          _
        %p180 = pneg %p48
        %p181 = pneg %p45
        %s182 = sand.u32 %s63, 1
        %s183 = scalar_lea.sflag [#allocation6], %s182
        %s184 = sand.u32 %s63, 1
        %s185 = smul.addr %s184, 64
        %s186 = scalar_lea.vmem [#allocation5], %s185
        %p187 = pneg %p76
        %p188 = pneg %p73
        %p189 = pneg %p104
        %p190 = pneg %p101
        %s191 = sand.u32 %s91, 1
        %s192 = scalar_lea.sflag [#allocation4], %s191
        %s193 = sand.u32 %s91, 1
        %s194 = smul.addr %s193, 384
        %s195 = scalar_lea.vmem [#allocation7], %s194
        %s196 = smul.u32 2, %s25
        %s197 = smul.u32 2, %s25
        %v198 = vld [vmem:[%s175] sm:$0xff]
        %v199 = vld [vmem:[%s175 + $0x8] sm:$0xff]
        %v200 = vld [vmem:[%s175 + $0x10] sm:$0xff]
        %v201 = vld [vmem:[%s175 + $0x18] sm:$0xff]
        %v202 = vld [vmem:[%s175 + $0x20] sm:$0xff]
        %v203 = vld [vmem:[%s175 + $0x28] sm:$0xff]
        %v204 = vld [vmem:[%s175 + $0x30] sm:$0xff]
        %v205 = vld [vmem:[%s175 + $0x38] sm:$0xff]
        %206 = vst [vmem:[%s195] sm:$0xff] %v198
        %207 = vst [vmem:[%s195 + $0x8] sm:$0xff] %v199
        %208 = vst [vmem:[%s195 + $0x10] sm:$0xff] %v200
        %209 = vst [vmem:[%s195 + $0x18] sm:$0xff] %v201
        %210 = vst [vmem:[%s195 + $0x20] sm:$0xff] %v202
        %211 = vst [vmem:[%s195 + $0x28] sm:$0xff] %v203
        %212 = vst [vmem:[%s195 + $0x30] sm:$0xff] %v204
        %213 = vst [vmem:[%s195 + $0x38] sm:$0xff] %v205
        %v214 = vld [vmem:[#allocation2] ss:$8 sm:$0x3]
        %v216 = vlaneseq
        %v217 = vshrl.u32 %v216, 7
        %v218 = vsub.s32 0, %v217
        %v219 = vrot.slane %v214, %v218
        %v220 = vlaneseq
        %v221 = vshrl.u32 %v220, 7
        %v222 = vsub.s32 1, %v221
        %v223 = vrot.slane %v214, %v222
        %s226 = scalar_lea.vmem %s195, 64 [#allocation7]
        %227 = vst [vmem:[%s226] sm:$0xff] %v219
        %228 = vst [vmem:[%s226 + $0x8] sm:$0xff] %v223
        %229 = vst [vmem:[%s226 + $0x10] sm:$0xff] %v219
        %230 = vst [vmem:[%s226 + $0x18] sm:$0xff] %v223
        %s231 = scalar_lea.vmem [#allocation2], 1
        %v232 = vld [vmem:[%s231] ss:$8 sm:$0x3]
        %v234 = vlaneseq
        %v235 = vshrl.u32 %v234, 7
        %v236 = vsub.s32 0, %v235
        %v237 = vrot.slane %v232, %v236
        %v238 = vlaneseq
        %v239 = vshrl.u32 %v238, 7
        %v240 = vsub.s32 1, %v239
        %v241 = vrot.slane %v232, %v240
        %s244 = scalar_lea.vmem %s195, 96 [#allocation7]
        %245 = vst [vmem:[%s244] sm:$0xff] %v237
        %246 = vst [vmem:[%s244 + $0x8] sm:$0xff] %v241
        %247 = vst [vmem:[%s244 + $0x10] sm:$0xff] %v237
        %248 = vst [vmem:[%s244 + $0x18] sm:$0xff] %v241
        %s249 = scalar_lea.vmem [#allocation2], 2
        %v250 = vld [vmem:[%s249] ss:$8 sm:$0x3]
        %v252 = vlaneseq
        %v253 = vshrl.u32 %v252, 7
        %v254 = vsub.s32 0, %v253
        %v255 = vrot.slane %v250, %v254
        %v256 = vlaneseq
        %v257 = vshrl.u32 %v256, 7
        %v258 = vsub.s32 1, %v257
        %v259 = vrot.slane %v250, %v258
        %s262 = scalar_lea.vmem %s195, 128 [#allocation7]
        %263 = vst [vmem:[%s262] sm:$0xff] %v255
        %264 = vst [vmem:[%s262 + $0x8] sm:$0xff] %v259
        %265 = vst [vmem:[%s262 + $0x10] sm:$0xff] %v255
        %266 = vst [vmem:[%s262 + $0x18] sm:$0xff] %v259
        %s267 = scalar_lea.vmem [#allocation2], 3
        %v268 = vld [vmem:[%s267] ss:$8 sm:$0x3]
        %v270 = vlaneseq
        %v271 = vshrl.u32 %v270, 7
        %v272 = vsub.s32 0, %v271
        %v273 = vrot.slane %v268, %v272
        %v274 = vlaneseq
        %v275 = vshrl.u32 %v274, 7
        %v276 = vsub.s32 1, %v275
        %v277 = vrot.slane %v268, %v276
        %s280 = scalar_lea.vmem %s195, 160 [#allocation7]
        %281 = vst [vmem:[%s280] sm:$0xff] %v273
        %282 = vst [vmem:[%s280 + $0x8] sm:$0xff] %v277
        %283 = vst [vmem:[%s280 + $0x10] sm:$0xff] %v273
        %284 = vst [vmem:[%s280 + $0x18] sm:$0xff] %v277
        %s285 = scalar_lea.vmem [#allocation2], 4
        %v286 = vld [vmem:[%s285] ss:$8 sm:$0x3]
        %v288 = vlaneseq
        %v289 = vshrl.u32 %v288, 7
        %v290 = vsub.s32 0, %v289
        %v291 = vrot.slane %v286, %v290
        %v292 = vlaneseq
        %v293 = vshrl.u32 %v292, 7
        %v294 = vsub.s32 1, %v293
        %v295 = vrot.slane %v286, %v294
        %s298 = scalar_lea.vmem %s195, 192 [#allocation7]
        %299 = vst [vmem:[%s298] sm:$0xff] %v291
        %300 = vst [vmem:[%s298 + $0x8] sm:$0xff] %v295
        %301 = vst [vmem:[%s298 + $0x10] sm:$0xff] %v291
        %302 = vst [vmem:[%s298 + $0x18] sm:$0xff] %v295
        %s303 = scalar_lea.vmem [#allocation2], 5
        %v304 = vld [vmem:[%s303] ss:$8 sm:$0x3]
        %v306 = vlaneseq
        %v307 = vshrl.u32 %v306, 7
        %v308 = vsub.s32 0, %v307
        %v309 = vrot.slane %v304, %v308
        %v310 = vlaneseq
        %v311 = vshrl.u32 %v310, 7
        %v312 = vsub.s32 1, %v311
        %v313 = vrot.slane %v304, %v312
        %s316 = scalar_lea.vmem %s195, 224 [#allocation7]
        %317 = vst [vmem:[%s316] sm:$0xff] %v309
        %318 = vst [vmem:[%s316 + $0x8] sm:$0xff] %v313
        %319 = vst [vmem:[%s316 + $0x10] sm:$0xff] %v309
        %320 = vst [vmem:[%s316 + $0x18] sm:$0xff] %v313
        %s321 = scalar_lea.vmem [#allocation2], 6
        %v322 = vld [vmem:[%s321] ss:$8 sm:$0x3]
        %v324 = vlaneseq
        %v325 = vshrl.u32 %v324, 7
        %v326 = vsub.s32 0, %v325
        %v327 = vrot.slane %v322, %v326
        %v328 = vlaneseq
        %v329 = vshrl.u32 %v328, 7
        %v330 = vsub.s32 1, %v329
        %v331 = vrot.slane %v322, %v330
        %s334 = scalar_lea.vmem %s195, 256 [#allocation7]
        %335 = vst [vmem:[%s334] sm:$0xff] %v327
        %336 = vst [vmem:[%s334 + $0x8] sm:$0xff] %v331
        %337 = vst [vmem:[%s334 + $0x10] sm:$0xff] %v327
        %338 = vst [vmem:[%s334 + $0x18] sm:$0xff] %v331
        %s339 = scalar_lea.vmem [#allocation2], 7
        %v340 = vld [vmem:[%s339] ss:$8 sm:$0x3]
        %v342 = vlaneseq
        %v343 = vshrl.u32 %v342, 7
        %v344 = vsub.s32 0, %v343
        %v345 = vrot.slane %v340, %v344
        %v346 = vlaneseq
        %v347 = vshrl.u32 %v346, 7
        %v348 = vsub.s32 1, %v347
        %v349 = vrot.slane %v340, %v348
        %s352 = scalar_lea.vmem %s195, 288 [#allocation7]
        %353 = vst [vmem:[%s352] sm:$0xff] %v345
        %354 = vst [vmem:[%s352 + $0x8] sm:$0xff] %v349
        %355 = vst [vmem:[%s352 + $0x10] sm:$0xff] %v345
        %356 = vst [vmem:[%s352 + $0x18] sm:$0xff] %v349
        %s357 = scalar_lea.vmem [#allocation2], 16
        %v358 = vld [vmem:[%s357] ss:$8 sm:$0x3]
        %v360 = vlaneseq
        %v361 = vshrl.u32 %v360, 7
        %v362 = vsub.s32 0, %v361
        %v363 = vrot.slane %v358, %v362
        %v364 = vlaneseq
        %v365 = vshrl.u32 %v364, 7
        %v366 = vsub.s32 1, %v365
        %v367 = vrot.slane %v358, %v366
        %s370 = scalar_lea.vmem %s195, 320 [#allocation7]
        %371 = vst [vmem:[%s370] sm:$0xff] %v363
        %372 = vst [vmem:[%s370 + $0x8] sm:$0xff] %v367
        %373 = vst [vmem:[%s370 + $0x10] sm:$0xff] %v363
        %374 = vst [vmem:[%s370 + $0x18] sm:$0xff] %v367
        %s375 = scalar_lea.vmem [#allocation2], 17
        %v376 = vld [vmem:[%s375] ss:$8 sm:$0x3]
        %v378 = vlaneseq
        %v379 = vshrl.u32 %v378, 7
        %v380 = vsub.s32 0, %v379
        %v381 = vrot.slane %v376, %v380
        %v382 = vlaneseq
        %v383 = vshrl.u32 %v382, 7
        %v384 = vsub.s32 1, %v383
        %v385 = vrot.slane %v376, %v384
        %s388 = scalar_lea.vmem %s195, 352 [#allocation7]
        %389 = vst [vmem:[%s388] sm:$0xff] %v381
        %390 = vst [vmem:[%s388 + $0x8] sm:$0xff] %v385
        %391 = vst [vmem:[%s388 + $0x10] sm:$0xff] %v381
        %392 = vst [vmem:[%s388 + $0x18] sm:$0xff] %v385
        %s393 = sand.u32 %s91, 1
        %s394 = scalar_lea.sflag [#allocation4], %s393
        %s395 = sand.u32 %s91, 1
        %s396 = smul.addr %s395, 384
        %s397 = scalar_lea.vmem [#allocation7], %s396
        // Predicated region
        $region37: #{tpu_custom_call.1} parent=27 // pred_check
          %p398 = pneg %p101
        $region38: #{tpu_custom_call.1} parent=27 // pred_check_branch
          %400 = sbr.rel (%p398) target = $region40
        $region39: #{tpu_custom_call.1} parent=27 // pred_region
          %s401 = smul.u32 2, %s25
          %s403 = ssub.s32 6144, 6144
          %404 = vsyncadd %s394, %s403
          %s405 = smul.addr %s401, 2
          %s406 = smul.addr %s24, 48
          %s407 = sadd.s32 %s405, %s406
          %s408 = smul.addr %s407, 128
          %s409 = scalar_lea.hbm %s2, %s408
          %s410 = sshll.u32 %s397, 4
          %s411 = int_to_ptr.vmem [resolvable:$true] %s410
          %416 = dma.vmem_to_hbm [thread:$0]  %s411, 6144, %s409, %s394, 256, 256, 16
        $region40: #{tpu_custom_call.1} parent=27 // pred_fallthru
          _
      $region28: #{tpu_custom_call.1} parent=5 // pred_fallthru
        _
      %p417 = scmp.le.s32.totalorder 2, %s15
      // Predicated region
      $region41: #{tpu_custom_call.1} parent=5 // pred_check
        %p418 = pneg %p417
      $region42: #{tpu_custom_call.1} parent=5 // pred_check_branch
        %420 = sbr.rel (%p418) target = $region44
      $region43: #{tpu_custom_call.1} parent=5 // pred_region
        %s421 = ssub.s32 %s15, 2
        // Predicated region
        $region45: #{tpu_custom_call.1} parent=43 // pred_check
          %p422 = pneg %p107
        $region46: #{tpu_custom_call.1} parent=43 // pred_check_branch
          %424 = sbr.rel (%p422) target = $region48
        $region47: #{tpu_custom_call.1} parent=43 // pred_region
          %s425 = sand.u32 %s92, 1
          %s426 = scalar_lea.sflag [#allocation4], %s425
          %s427 = sand.u32 %s92, 1
          %s428 = smul.addr %s427, 384
          %s429 = scalar_lea.vmem [#allocation7], %s428
          %430 = dma.done %s426, 6144
        $region48: #{tpu_custom_call.1} parent=43 // pred_fallthru
          _
      $region44: #{tpu_custom_call.1} parent=5 // pred_fallthru
        _
    $region6: #{tpu_custom_call.1} parent=1 // loop_footer
      %s19 = sadd.s32 1, %s15
    $region7: #{tpu_custom_call.1} parent=1 // loop_footer_branch
      %14 = sbr.rel target = $region3
    $region8: #{tpu_custom_call.1} parent=1 // loop_exit
      _
    %431 = vsyncpa [#allocation3], 1
    %s432 = scalar_lea.sflag [#allocation3], 1
    %433 = vsyncpa %s432, 1
    %434 = vsyncpa [#allocation6], 1
    %s435 = scalar_lea.sflag [#allocation6], 1
    %436 = vsyncpa %s435, 1
    %437 = vsyncpa [#allocation4], 1
    %s438 = scalar_lea.sflag [#allocation4], 1
    %439 = vsyncpa %s438, 1

</llo_original>
